<compile_context>
chip_gen: v7x
topology: tpu7x:2x2x1
jax: 0.10.0
libtpu: 0.0.40
codegen_flags: <defaults>
</compile_context>

<pallas_src>
import functools

import jax
import jax.numpy as jnp
from jax.experimental import pallas as pl
from jax.experimental.pallas import tpu as pltpu


def _patch_merger_kernel(x_ref, ln_ref, w_ref, wb_ref, wp_ref, bp_ref, o_ref,
                         *, n_tok, n_out, d_proj, scale, ln_eps):
    f32 = jnp.float32
    x = x_ref[...].astype(f32)                          # (Bt*N, D)
    ln = ln_ref[...].astype(f32)                        # (4, D) stacked LN params
    g1, b1 = ln[0:1, :], ln[1:2, :]
    g2, b2 = ln[2:3, :], ln[3:4, :]

    # ---- self.norm = LayerNorm(dim); feat_drop(p=0) is identity ----------
    mu = jnp.mean(x, axis=-1, keepdims=True)
    xc = x - mu
    var = jnp.mean(xc * xc, axis=-1, keepdims=True)
    xn = xc * jax.lax.rsqrt(var + ln_eps) * g1 + b1     # (Bt*N, D)

    # ---- a = scale * (xn @ W_eff + bias); softmax over M (output tokens) --
    # (matches torch softmax(dim=1) applied after 'B N M -> B M N')
    logits = jnp.dot(xn, w_ref[...].astype(f32), preferred_element_type=f32)
    logits = scale * (logits + wb_ref[...].astype(f32))            # (Bt*N, M)
    logits = logits - jnp.max(logits, axis=-1, keepdims=True)
    e = jnp.exp(logits)
    p = e * pl.reciprocal(jnp.sum(e, axis=-1, keepdims=True), approx=True)

    # ---- per-sample token mix + proj (LayerNorm -> Linear) ----------------
    bt = x.shape[0] // n_tok
    xn3 = xn.reshape(bt, n_tok, xn.shape[-1])           # (Bt, N, D) split-leading
    p3 = p.reshape(bt, n_tok, n_out)                    # (Bt, N, M)
    wp = wp_ref[...].astype(f32)                        # (D, Dp)
    bp = bp_ref[...].astype(f32)                        # (1, Dp)

    for m in range(n_out):                              # static unroll, M is small
        # y_m[b, :] = sum_n p[b, n, m] * xn[b, n, :]   (== matmul(a, x) row m)
        y = jnp.sum(xn3 * p3[:, :, m:m + 1], axis=1)    # (Bt, D)
        mu2 = jnp.mean(y, axis=-1, keepdims=True)
        yc = y - mu2
        var2 = jnp.mean(yc * yc, axis=-1, keepdims=True)
        yn = yc * jax.lax.rsqrt(var2 + ln_eps) * g2 + b2
        out = jnp.dot(yn, wp, preferred_element_type=f32) + bp     # (Bt, Dp)
        # lane-offset store into the lane-dense (Bt, M*Dp) output block
        o_ref[:, m * d_proj:(m + 1) * d_proj] = out.astype(o_ref.dtype)


def _pick_block_batch(B, N, D, dtype_bytes=4):
    """Pick Bt (samples per grid step).

    Targets: Bt ~128 so the projection GEMMs have full MXU rows and Bt*N >> the
    ~600-cycle per-step pipeline overhead; the double-buffered x block stays
    tiny relative to VMEM (well under the 32 MiB scoped default on v7x); keep
    >=2 grid steps when that doesn't starve the per-step GEMMs (v7x has 2 TCs).
    """
    vmem_budget = 8 << 20                      # bytes for the 2x-buffered x block
    cap = max(1, vmem_budget // max(1, 2 * N * D * dtype_bytes))
    bt = min(B, 128, cap)
    if B // bt < 2 and (B // 2) * N >= 256:
        bt = B // 2

    def ok(b):  # (8,128) sublane constraints for the x (b*N rows) / out (b rows) blocks
        return (b >= 1 and B % b == 0
                and ((b * N) % 8 == 0 or b == B)
                and (b % 8 == 0 or b == B))

    while bt > 1 and not ok(bt):
        bt -= 1
    if not ok(bt):
        bt = B
    return bt


def patch_merger_bottleneck(x, params, *, eps=1e-8, ln_eps=1e-5,
                            block_batch=None, input_dtype=None):
    """x: [B, N, D]. Returns [B, M, Dp] in x's dtype."""
    B, N, D = x.shape
    out_dtype = x.dtype
    W = params["W"]                       # [D, M]
    M = W.shape[1]
    Wp = params["proj_W"]                 # [D, Dp]
    Dp = Wp.shape[1]
    scale = float(Dp) ** -0.5             # dim_proj ** -0.5

    # Parameter prep (glue): W_eff = W_scale * W / (||W||_{dim=0} + eps)
    col_norm = jnp.sqrt(jnp.sum(W.astype(jnp.float32) ** 2, axis=0))      # [M]
    W_eff = (params["W_scale"].astype(jnp.float32)
             * W.astype(jnp.float32) / (col_norm + eps))                  # [D, M]

    # Stack the four D-length LayerNorm vectors into one (4, D) tile.
    ln_stack = jnp.stack(
        [params["norm_gamma"], params["norm_beta"],
         params["proj_gamma"], params["proj_beta"]], axis=0).astype(jnp.float32)
    wb = params["bias"].reshape(1, M).astype(jnp.float32)
    bp = params["proj_b"].reshape(1, Dp).astype(jnp.float32)

    # Optional: ship the big activation in bf16 (HBM-bandwidth win on v5e);
    # kernel upcasts to f32 before any math. (bf16 prefers Bt*N % 16 == 0.)
    if input_dtype is not None:
        x = x.astype(input_dtype)

    bt = block_batch or _pick_block_batch(B, N, D, dtype_bytes=x.dtype.itemsize)
    assert B % bt == 0, (B, bt)

    x2d = x.reshape(B * N, D)             # free reshape in the wrapper

    kernel = functools.partial(_patch_merger_kernel, n_tok=N, n_out=M,
                               d_proj=Dp, scale=scale, ln_eps=ln_eps)

    out_flat = pl.pallas_call(
        kernel,
        out_shape=jax.ShapeDtypeStruct((B, M * Dp), out_dtype),
        grid=(B // bt,),
        in_specs=[
            pl.BlockSpec((bt * N, D), lambda i: (i, 0)),    # x slab
            pl.BlockSpec((4, D), lambda i: (0, 0)),         # stacked LN gamma/beta
            pl.BlockSpec((D, M), lambda i: (0, 0)),         # W_eff
            pl.BlockSpec((1, M), lambda i: (0, 0)),         # bias
            pl.BlockSpec((D, Dp), lambda i: (0, 0)),        # proj weight
            pl.BlockSpec((1, Dp), lambda i: (0, 0)),        # proj bias
        ],
        out_specs=pl.BlockSpec((bt, M * Dp), lambda i: (i, 0)),  # lane-dense rows
        compiler_params=pltpu.CompilerParams(
            dimension_semantics=("parallel",)),
    )(x2d, ln_stack, W_eff, wb, Wp, bp)

    return out_flat.reshape(B, M, Dp)


def _reference(x, params, *, eps=1e-8, ln_eps=1e-5):
    """Pure-JAX reference mirroring the PyTorch forward."""
    Dp = params["proj_W"].shape[1]

    def layernorm(v, g, b):
        mu = jnp.mean(v, axis=-1, keepdims=True)
        var = jnp.mean((v - mu) ** 2, axis=-1, keepdims=True)
        return (v - mu) * jax.lax.rsqrt(var + ln_eps) * g + b

    xn = layernorm(x, params["norm_gamma"], params["norm_beta"])
    W = params["W"]
    W_eff = params["W_scale"] * W / (jnp.linalg.norm(W, axis=0) + eps)
    a = (Dp ** -0.5) * (xn @ W_eff + params["bias"])            # [B, N, M]
    a = jnp.transpose(a, (0, 2, 1))                             # [B, M, N]
    a = jax.nn.softmax(a, axis=1)                               # softmax over M
    y = jnp.einsum("bmn,bnd->bmd", a, xn)
    yn = layernorm(y, params["proj_gamma"], params["proj_beta"])
    return yn @ params["proj_W"] + params["proj_b"]


if __name__ == "__main__":
    B, N, D, M = 2, 8, 32, 4
    Dp = D  # dim_proj = dim_proj or dim

    key = jax.random.PRNGKey(0)
    ks = jax.random.split(key, 9)
    x = jax.random.normal(ks[0], (B, N, D), dtype=jnp.float32)

    k = D ** -0.5
    params = {
        # nn.LayerNorm default init (perturbed so the affine path is exercised)
        "norm_gamma": jnp.ones((D,), jnp.float32)
                      + 0.1 * jax.random.normal(ks[1], (D,), jnp.float32),
        "norm_beta": 0.1 * jax.random.normal(ks[2], (D,), jnp.float32),
        # self.W ~ U(-k, k), W_scale = ones, bias = zeros (as in __init__)
        "W": jax.random.uniform(ks[3], (D, M), jnp.float32, minval=-k, maxval=k),
        "W_scale": jnp.ones((M,), jnp.float32),
        "bias": jnp.zeros((M,), jnp.float32),
        # proj = LayerNorm(dim) -> Linear(dim, dim_proj)
        "proj_gamma": jnp.ones((D,), jnp.float32)
                      + 0.1 * jax.random.normal(ks[4], (D,), jnp.float32),
        "proj_beta": 0.1 * jax.random.normal(ks[5], (D,), jnp.float32),
        "proj_W": k * jax.random.normal(ks[6], (D, Dp), jnp.float32),
        "proj_b": 0.01 * jax.random.normal(ks[7], (Dp,), jnp.float32),
    }

    out = patch_merger_bottleneck(x, params)
    out = jax.block_until_ready(out)

    ref = _reference(x, params)
    assert out.shape == (B, M, Dp), out.shape
    # Tolerance slightly relaxed because the softmax denominator uses the EUP
    # approximate reciprocal (pl.reciprocal(approx=True)).
    assert jnp.allclose(out, ref, atol=5e-3, rtol=5e-3), float(
        jnp.max(jnp.abs(out - ref)))

    print("KERNEL_OK")
</pallas_src>

<mosaic_0001>
module attributes {stable_mosaic.version = 11 : i64} {
  func.func @_patch_merger_kernel(%arg0: i32, %arg1: memref<16x32xf32, #tpu.memory_space<vmem>>, %arg2: memref<4x32xf32, #tpu.memory_space<vmem>>, %arg3: memref<32x4xf32, #tpu.memory_space<vmem>>, %arg4: memref<1x4xf32, #tpu.memory_space<vmem>>, %arg5: memref<32x32xf32, #tpu.memory_space<vmem>>, %arg6: memref<1x32xf32, #tpu.memory_space<vmem>>, %arg7: memref<2x128xf32, #tpu.memory_space<vmem>>) attributes {dimension_semantics = [#tpu.dimension_semantics<parallel>], iteration_bounds = array<i64: 1>, scalar_prefetch = 0 : i64, scratch_operands = 0 : i64, tpu.core_type = #tpu.core_type<tc>, window_params = [{transform_indices = @transform_0, window_bounds = array<i64: 16, 32>}, {pipeline_mode = #tpu.pipeline_mode<synchronous>, transform_indices = @transform_1, window_bounds = array<i64: 4, 32>}, {pipeline_mode = #tpu.pipeline_mode<synchronous>, transform_indices = @transform_2, window_bounds = array<i64: 32, 4>}, {pipeline_mode = #tpu.pipeline_mode<synchronous>, transform_indices = @transform_3, window_bounds = array<i64: 1, 4>}, {pipeline_mode = #tpu.pipeline_mode<synchronous>, transform_indices = @transform_4, window_bounds = array<i64: 32, 32>}, {pipeline_mode = #tpu.pipeline_mode<synchronous>, transform_indices = @transform_5, window_bounds = array<i64: 1, 32>}, {transform_indices = @transform_6, window_bounds = array<i64: 2, 128>}]} {
    %c0 = arith.constant 0 : index
    %c0_0 = arith.constant 0 : index
    %0 = vector.load %arg1[%c0, %c0_0] : memref<16x32xf32, #tpu.memory_space<vmem>>, vector<16x32xf32>
    %c0_1 = arith.constant 0 : index
    %c0_2 = arith.constant 0 : index
    %1 = vector.load %arg2[%c0_1, %c0_2] : memref<4x32xf32, #tpu.memory_space<vmem>>, vector<4x32xf32>
    %2 = vector.extract_strided_slice %1 {offsets = [0, 0], sizes = [1, 32], strides = [1, 1]} : vector<4x32xf32> to vector<1x32xf32>
    %3 = vector.extract_strided_slice %1 {offsets = [1, 0], sizes = [1, 32], strides = [1, 1]} : vector<4x32xf32> to vector<1x32xf32>
    %4 = vector.extract_strided_slice %1 {offsets = [2, 0], sizes = [1, 32], strides = [1, 1]} : vector<4x32xf32> to vector<1x32xf32>
    %5 = vector.extract_strided_slice %1 {offsets = [3, 0], sizes = [1, 32], strides = [1, 1]} : vector<4x32xf32> to vector<1x32xf32>
    %cst = arith.constant dense<0.000000e+00> : vector<16xf32>
    %6 = vector.multi_reduction <add>, %0, %cst [1] : vector<16x32xf32> to vector<16xf32>
    %7 = vector.shape_cast %6 : vector<16xf32> to vector<16x1xf32>
    %cst_3 = arith.constant 3.200000e+01 : f32
    %8 = vector.broadcast %cst_3 : f32 to vector<16x1xf32>
    %9 = arith.divf %7, %8 : vector<16x1xf32>
    %10 = vector.broadcast %9 : vector<16x1xf32> to vector<16x32xf32>
    %11 = arith.subf %0, %10 : vector<16x32xf32>
    %12 = arith.mulf %11, %11 : vector<16x32xf32>
    %cst_4 = arith.constant dense<0.000000e+00> : vector<16xf32>
    %13 = vector.multi_reduction <add>, %12, %cst_4 [1] : vector<16x32xf32> to vector<16xf32>
    %14 = vector.shape_cast %13 : vector<16xf32> to vector<16x1xf32>
    %cst_5 = arith.constant 3.200000e+01 : f32
    %15 = vector.broadcast %cst_5 : f32 to vector<16x1xf32>
    %16 = arith.divf %14, %15 : vector<16x1xf32>
    %cst_6 = arith.constant 9.99999974E-6 : f32
    %17 = vector.broadcast %cst_6 : f32 to vector<16x1xf32>
    %18 = arith.addf %16, %17 : vector<16x1xf32>
    %19 = math.rsqrt %18 : vector<16x1xf32>
    %20 = vector.broadcast %19 : vector<16x1xf32> to vector<16x32xf32>
    %21 = arith.mulf %11, %20 : vector<16x32xf32>
    %22 = vector.broadcast %2 : vector<1x32xf32> to vector<16x32xf32>
    %23 = arith.mulf %21, %22 : vector<16x32xf32>
    %24 = vector.broadcast %3 : vector<1x32xf32> to vector<16x32xf32>
    %25 = arith.addf %23, %24 : vector<16x32xf32>
    %c0_7 = arith.constant 0 : index
    %c0_8 = arith.constant 0 : index
    %26 = vector.load %arg3[%c0_7, %c0_8] : memref<32x4xf32, #tpu.memory_space<vmem>>, vector<32x4xf32>
    %cst_9 = arith.constant dense<0.000000e+00> : vector<16x4xf32>
    %27 = tpu.matmul %25, %26, %cst_9 {dimension_numbers = #tpu.dot_dimension_numbers<[1], [0], [0], [1], [0, 0, 1, 1], [], []>} : vector<16x32xf32>, vector<32x4xf32>, vector<16x4xf32> -> vector<16x4xf32>
    %c0_10 = arith.constant 0 : index
    %c0_11 = arith.constant 0 : index
    %28 = vector.load %arg4[%c0_10, %c0_11] : memref<1x4xf32, #tpu.memory_space<vmem>>, vector<1x4xf32>
    %29 = vector.broadcast %28 : vector<1x4xf32> to vector<16x4xf32>
    %30 = arith.addf %27, %29 : vector<16x4xf32>
    %cst_12 = arith.constant 0.176776692 : f32
    %31 = vector.broadcast %cst_12 : f32 to vector<16x4xf32>
    %32 = arith.mulf %31, %30 : vector<16x4xf32>
    %cst_13 = arith.constant dense<0xFF800000> : vector<16xf32>
    %33 = vector.multi_reduction <maximumf>, %32, %cst_13 [1] : vector<16x4xf32> to vector<16xf32>
    %34 = vector.shape_cast %33 : vector<16xf32> to vector<16x1xf32>
    %35 = vector.broadcast %34 : vector<16x1xf32> to vector<16x4xf32>
    %36 = arith.subf %32, %35 : vector<16x4xf32>
    %37 = math.exp %36 : vector<16x4xf32>
    %cst_14 = arith.constant dense<0.000000e+00> : vector<16xf32>
    %38 = vector.multi_reduction <add>, %37, %cst_14 [1] : vector<16x4xf32> to vector<16xf32>
    %39 = vector.shape_cast %38 : vector<16xf32> to vector<16x1xf32>
    %40 = tpu.reciprocal %39 {approx = true} : vector<16x1xf32> -> vector<16x1xf32>
    %41 = vector.broadcast %40 : vector<16x1xf32> to vector<16x4xf32>
    %42 = arith.mulf %37, %41 : vector<16x4xf32>
    %43 = vector.shape_cast %25 : vector<16x32xf32> to vector<2x8x32xf32>
    %44 = vector.shape_cast %42 : vector<16x4xf32> to vector<2x8x4xf32>
    %c0_15 = arith.constant 0 : index
    %c0_16 = arith.constant 0 : index
    %45 = vector.load %arg5[%c0_15, %c0_16] : memref<32x32xf32, #tpu.memory_space<vmem>>, vector<32x32xf32>
    %c0_17 = arith.constant 0 : index
    %c0_18 = arith.constant 0 : index
    %46 = vector.load %arg6[%c0_17, %c0_18] : memref<1x32xf32, #tpu.memory_space<vmem>>, vector<1x32xf32>
    %47 = vector.extract_strided_slice %44 {offsets = [0, 0, 0], sizes = [2, 8, 1], strides = [1, 1, 1]} : vector<2x8x4xf32> to vector<2x8x1xf32>
    %48 = vector.broadcast %47 : vector<2x8x1xf32> to vector<2x8x32xf32>
    %49 = arith.mulf %43, %48 : vector<2x8x32xf32>
    %cst_19 = arith.constant dense<0.000000e+00> : vector<2x32xf32>
    %50 = vector.multi_reduction <add>, %49, %cst_19 [1] : vector<2x8x32xf32> to vector<2x32xf32>
    %cst_20 = arith.constant dense<0.000000e+00> : vector<2xf32>
    %51 = vector.multi_reduction <add>, %50, %cst_20 [1] : vector<2x32xf32> to vector<2xf32>
    %52 = vector.shape_cast %51 : vector<2xf32> to vector<2x1xf32>
    %cst_21 = arith.constant 3.200000e+01 : f32
    %53 = vector.broadcast %cst_21 : f32 to vector<2x1xf32>
    %54 = arith.divf %52, %53 : vector<2x1xf32>
    %55 = vector.broadcast %54 : vector<2x1xf32> to vector<2x32xf32>
    %56 = arith.subf %50, %55 : vector<2x32xf32>
    %57 = arith.mulf %56, %56 : vector<2x32xf32>
    %cst_22 = arith.constant dense<0.000000e+00> : vector<2xf32>
    %58 = vector.multi_reduction <add>, %57, %cst_22 [1] : vector<2x32xf32> to vector<2xf32>
    %59 = vector.shape_cast %58 : vector<2xf32> to vector<2x1xf32>
    %cst_23 = arith.constant 3.200000e+01 : f32
    %60 = vector.broadcast %cst_23 : f32 to vector<2x1xf32>
    %61 = arith.divf %59, %60 : vector<2x1xf32>
    %cst_24 = arith.constant 9.99999974E-6 : f32
    %62 = vector.broadcast %cst_24 : f32 to vector<2x1xf32>
    %63 = arith.addf %61, %62 : vector<2x1xf32>
    %64 = math.rsqrt %63 : vector<2x1xf32>
    %65 = vector.broadcast %64 : vector<2x1xf32> to vector<2x32xf32>
    %66 = arith.mulf %56, %65 : vector<2x32xf32>
    %67 = vector.broadcast %4 : vector<1x32xf32> to vector<2x32xf32>
    %68 = arith.mulf %66, %67 : vector<2x32xf32>
    %69 = vector.broadcast %5 : vector<1x32xf32> to vector<2x32xf32>
    %70 = arith.addf %68, %69 : vector<2x32xf32>
    %cst_25 = arith.constant dense<0.000000e+00> : vector<2x32xf32>
    %71 = tpu.matmul %70, %45, %cst_25 {dimension_numbers = #tpu.dot_dimension_numbers<[1], [0], [0], [1], [0, 0, 1, 1], [], []>} : vector<2x32xf32>, vector<32x32xf32>, vector<2x32xf32> -> vector<2x32xf32>
    %72 = vector.broadcast %46 : vector<1x32xf32> to vector<2x32xf32>
    %73 = arith.addf %71, %72 : vector<2x32xf32>
    %c0_26 = arith.constant 0 : index
    %c0_27 = arith.constant 0 : index
    %74 = vector.load %arg7[%c0_26, %c0_27] : memref<2x128xf32, #tpu.memory_space<vmem>>, vector<2x32xf32>
    tpu.vector_store %arg7[%c0_26, %c0_27], %73 {strides = array<i32>} : memref<2x128xf32, #tpu.memory_space<vmem>>, vector<2x32xf32>,
    %75 = vector.extract_strided_slice %44 {offsets = [0, 0, 1], sizes = [2, 8, 1], strides = [1, 1, 1]} : vector<2x8x4xf32> to vector<2x8x1xf32>
    %76 = vector.broadcast %75 : vector<2x8x1xf32> to vector<2x8x32xf32>
    %77 = arith.mulf %43, %76 : vector<2x8x32xf32>
    %cst_28 = arith.constant dense<0.000000e+00> : vector<2x32xf32>
    %78 = vector.multi_reduction <add>, %77, %cst_28 [1] : vector<2x8x32xf32> to vector<2x32xf32>
    %cst_29 = arith.constant dense<0.000000e+00> : vector<2xf32>
    %79 = vector.multi_reduction <add>, %78, %cst_29 [1] : vector<2x32xf32> to vector<2xf32>
    %80 = vector.shape_cast %79 : vector<2xf32> to vector<2x1xf32>
    %cst_30 = arith.constant 3.200000e+01 : f32
    %81 = vector.broadcast %cst_30 : f32 to vector<2x1xf32>
    %82 = arith.divf %80, %81 : vector<2x1xf32>
    %83 = vector.broadcast %82 : vector<2x1xf32> to vector<2x32xf32>
    %84 = arith.subf %78, %83 : vector<2x32xf32>
    %85 = arith.mulf %84, %84 : vector<2x32xf32>
    %cst_31 = arith.constant dense<0.000000e+00> : vector<2xf32>
    %86 = vector.multi_reduction <add>, %85, %cst_31 [1] : vector<2x32xf32> to vector<2xf32>
    %87 = vector.shape_cast %86 : vector<2xf32> to vector<2x1xf32>
    %cst_32 = arith.constant 3.200000e+01 : f32
    %88 = vector.broadcast %cst_32 : f32 to vector<2x1xf32>
    %89 = arith.divf %87, %88 : vector<2x1xf32>
    %cst_33 = arith.constant 9.99999974E-6 : f32
    %90 = vector.broadcast %cst_33 : f32 to vector<2x1xf32>
    %91 = arith.addf %89, %90 : vector<2x1xf32>
    %92 = math.rsqrt %91 : vector<2x1xf32>
    %93 = vector.broadcast %92 : vector<2x1xf32> to vector<2x32xf32>
    %94 = arith.mulf %84, %93 : vector<2x32xf32>
    %95 = vector.broadcast %4 : vector<1x32xf32> to vector<2x32xf32>
    %96 = arith.mulf %94, %95 : vector<2x32xf32>
    %97 = vector.broadcast %5 : vector<1x32xf32> to vector<2x32xf32>
    %98 = arith.addf %96, %97 : vector<2x32xf32>
    %cst_34 = arith.constant dense<0.000000e+00> : vector<2x32xf32>
    %99 = tpu.matmul %98, %45, %cst_34 {dimension_numbers = #tpu.dot_dimension_numbers<[1], [0], [0], [1], [0, 0, 1, 1], [], []>} : vector<2x32xf32>, vector<32x32xf32>, vector<2x32xf32> -> vector<2x32xf32>
    %100 = vector.broadcast %46 : vector<1x32xf32> to vector<2x32xf32>
    %101 = arith.addf %99, %100 : vector<2x32xf32>
    %c0_35 = arith.constant 0 : index
    %c32 = arith.constant 32 : index
    %102 = vector.load %arg7[%c0_35, %c32] : memref<2x128xf32, #tpu.memory_space<vmem>>, vector<2x32xf32>
    tpu.vector_store %arg7[%c0_35, %c32], %101 {strides = array<i32>} : memref<2x128xf32, #tpu.memory_space<vmem>>, vector<2x32xf32>,
    %103 = vector.extract_strided_slice %44 {offsets = [0, 0, 2], sizes = [2, 8, 1], strides = [1, 1, 1]} : vector<2x8x4xf32> to vector<2x8x1xf32>
    %104 = vector.broadcast %103 : vector<2x8x1xf32> to vector<2x8x32xf32>
    %105 = arith.mulf %43, %104 : vector<2x8x32xf32>
    %cst_36 = arith.constant dense<0.000000e+00> : vector<2x32xf32>
    %106 = vector.multi_reduction <add>, %105, %cst_36 [1] : vector<2x8x32xf32> to vector<2x32xf32>
    %cst_37 = arith.constant dense<0.000000e+00> : vector<2xf32>
    %107 = vector.multi_reduction <add>, %106, %cst_37 [1] : vector<2x32xf32> to vector<2xf32>
    %108 = vector.shape_cast %107 : vector<2xf32> to vector<2x1xf32>
    %cst_38 = arith.constant 3.200000e+01 : f32
    %109 = vector.broadcast %cst_38 : f32 to vector<2x1xf32>
    %110 = arith.divf %108, %109 : vector<2x1xf32>
    %111 = vector.broadcast %110 : vector<2x1xf32> to vector<2x32xf32>
    %112 = arith.subf %106, %111 : vector<2x32xf32>
    %113 = arith.mulf %112, %112 : vector<2x32xf32>
    %cst_39 = arith.constant dense<0.000000e+00> : vector<2xf32>
    %114 = vector.multi_reduction <add>, %113, %cst_39 [1] : vector<2x32xf32> to vector<2xf32>
    %115 = vector.shape_cast %114 : vector<2xf32> to vector<2x1xf32>
    %cst_40 = arith.constant 3.200000e+01 : f32
    %116 = vector.broadcast %cst_40 : f32 to vector<2x1xf32>
    %117 = arith.divf %115, %116 : vector<2x1xf32>
    %cst_41 = arith.constant 9.99999974E-6 : f32
    %118 = vector.broadcast %cst_41 : f32 to vector<2x1xf32>
    %119 = arith.addf %117, %118 : vector<2x1xf32>
    %120 = math.rsqrt %119 : vector<2x1xf32>
    %121 = vector.broadcast %120 : vector<2x1xf32> to vector<2x32xf32>
    %122 = arith.mulf %112, %121 : vector<2x32xf32>
    %123 = vector.broadcast %4 : vector<1x32xf32> to vector<2x32xf32>
    %124 = arith.mulf %122, %123 : vector<2x32xf32>
    %125 = vector.broadcast %5 : vector<1x32xf32> to vector<2x32xf32>
    %126 = arith.addf %124, %125 : vector<2x32xf32>
    %cst_42 = arith.constant dense<0.000000e+00> : vector<2x32xf32>
    %127 = tpu.matmul %126, %45, %cst_42 {dimension_numbers = #tpu.dot_dimension_numbers<[1], [0], [0], [1], [0, 0, 1, 1], [], []>} : vector<2x32xf32>, vector<32x32xf32>, vector<2x32xf32> -> vector<2x32xf32>
    %128 = vector.broadcast %46 : vector<1x32xf32> to vector<2x32xf32>
    %129 = arith.addf %127, %128 : vector<2x32xf32>
    %c0_43 = arith.constant 0 : index
    %c64 = arith.constant 64 : index
    %130 = vector.load %arg7[%c0_43, %c64] : memref<2x128xf32, #tpu.memory_space<vmem>>, vector<2x32xf32>
    tpu.vector_store %arg7[%c0_43, %c64], %129 {strides = array<i32>} : memref<2x128xf32, #tpu.memory_space<vmem>>, vector<2x32xf32>,
    %131 = vector.extract_strided_slice %44 {offsets = [0, 0, 3], sizes = [2, 8, 1], strides = [1, 1, 1]} : vector<2x8x4xf32> to vector<2x8x1xf32>
    %132 = vector.broadcast %131 : vector<2x8x1xf32> to vector<2x8x32xf32>
    %133 = arith.mulf %43, %132 : vector<2x8x32xf32>
    %cst_44 = arith.constant dense<0.000000e+00> : vector<2x32xf32>
    %134 = vector.multi_reduction <add>, %133, %cst_44 [1] : vector<2x8x32xf32> to vector<2x32xf32>
    %cst_45 = arith.constant dense<0.000000e+00> : vector<2xf32>
    %135 = vector.multi_reduction <add>, %134, %cst_45 [1] : vector<2x32xf32> to vector<2xf32>
    %136 = vector.shape_cast %135 : vector<2xf32> to vector<2x1xf32>
    %cst_46 = arith.constant 3.200000e+01 : f32
    %137 = vector.broadcast %cst_46 : f32 to vector<2x1xf32>
    %138 = arith.divf %136, %137 : vector<2x1xf32>
    %139 = vector.broadcast %138 : vector<2x1xf32> to vector<2x32xf32>
    %140 = arith.subf %134, %139 : vector<2x32xf32>
    %141 = arith.mulf %140, %140 : vector<2x32xf32>
    %cst_47 = arith.constant dense<0.000000e+00> : vector<2xf32>
    %142 = vector.multi_reduction <add>, %141, %cst_47 [1] : vector<2x32xf32> to vector<2xf32>
    %143 = vector.shape_cast %142 : vector<2xf32> to vector<2x1xf32>
    %cst_48 = arith.constant 3.200000e+01 : f32
    %144 = vector.broadcast %cst_48 : f32 to vector<2x1xf32>
    %145 = arith.divf %143, %144 : vector<2x1xf32>
    %cst_49 = arith.constant 9.99999974E-6 : f32
    %146 = vector.broadcast %cst_49 : f32 to vector<2x1xf32>
    %147 = arith.addf %145, %146 : vector<2x1xf32>
    %148 = math.rsqrt %147 : vector<2x1xf32>
    %149 = vector.broadcast %148 : vector<2x1xf32> to vector<2x32xf32>
    %150 = arith.mulf %140, %149 : vector<2x32xf32>
    %151 = vector.broadcast %4 : vector<1x32xf32> to vector<2x32xf32>
    %152 = arith.mulf %150, %151 : vector<2x32xf32>
    %153 = vector.broadcast %5 : vector<1x32xf32> to vector<2x32xf32>
    %154 = arith.addf %152, %153 : vector<2x32xf32>
    %cst_50 = arith.constant dense<0.000000e+00> : vector<2x32xf32>
    %155 = tpu.matmul %154, %45, %cst_50 {dimension_numbers = #tpu.dot_dimension_numbers<[1], [0], [0], [1], [0, 0, 1, 1], [], []>} : vector<2x32xf32>, vector<32x32xf32>, vector<2x32xf32> -> vector<2x32xf32>
    %156 = vector.broadcast %46 : vector<1x32xf32> to vector<2x32xf32>
    %157 = arith.addf %155, %156 : vector<2x32xf32>
    %c0_51 = arith.constant 0 : index
    %c96 = arith.constant 96 : index
    %158 = vector.load %arg7[%c0_51, %c96] : memref<2x128xf32, #tpu.memory_space<vmem>>, vector<2x32xf32>
    tpu.vector_store %arg7[%c0_51, %c96], %157 {strides = array<i32>} : memref<2x128xf32, #tpu.memory_space<vmem>>, vector<2x32xf32>,
    return
  }
  func.func @transform_0(%arg0: i32) -> (i32, i32) {
    %c0_i32 = arith.constant 0 : i32
    %c0_i32_0 = arith.constant 0 : i32
    return %arg0, %c0_i32 : i32, i32
  }
  func.func @transform_1(%arg0: i32) -> (i32, i32) {
    %c0_i32 = arith.constant 0 : i32
    %c0_i32_0 = arith.constant 0 : i32
    %c0_i32_1 = arith.constant 0 : i32
    return %c0_i32, %c0_i32_0 : i32, i32
  }
  func.func @transform_2(%arg0: i32) -> (i32, i32) {
    %c0_i32 = arith.constant 0 : i32
    %c0_i32_0 = arith.constant 0 : i32
    %c0_i32_1 = arith.constant 0 : i32
    return %c0_i32, %c0_i32_0 : i32, i32
  }
  func.func @transform_3(%arg0: i32) -> (i32, i32) {
    %c0_i32 = arith.constant 0 : i32
    %c0_i32_0 = arith.constant 0 : i32
    %c0_i32_1 = arith.constant 0 : i32
    return %c0_i32, %c0_i32_0 : i32, i32
  }
  func.func @transform_4(%arg0: i32) -> (i32, i32) {
    %c0_i32 = arith.constant 0 : i32
    %c0_i32_0 = arith.constant 0 : i32
    %c0_i32_1 = arith.constant 0 : i32
    return %c0_i32, %c0_i32_0 : i32, i32
  }
  func.func @transform_5(%arg0: i32) -> (i32, i32) {
    %c0_i32 = arith.constant 0 : i32
    %c0_i32_0 = arith.constant 0 : i32
    %c0_i32_1 = arith.constant 0 : i32
    return %c0_i32, %c0_i32_0 : i32, i32
  }
  func.func @transform_6(%arg0: i32) -> (i32, i32) {
    %c0_i32 = arith.constant 0 : i32
    %c0_i32_0 = arith.constant 0 : i32
    return %arg0, %c0_i32 : i32, i32
  }
}

</mosaic_0001>

<llo_original>
// kernel: tpu_custom_call.1
$region0: #{tpu_custom_call.1}
  #allocation0 [shape = 'u32[]', space=smem, size = 0x4, offset = 0x4, fixed_abs, tag = 'smem constant byte address 0x4 - core index']
  #allocation1 [shape = 'u32[144,128]{1,0:T(1,128)}', space=vmem, size = 0x12000, scoped, tag = 'internal scratch']
  %s0 = inlined_call_operand.vmem [shape: f32[16,32], index: 0, kind: input, shape index: {}]
  %s1 = inlined_call_operand.hbm [shape: f32[4,32], index: 1, kind: input, shape index: {}]
  %s2 = inlined_call_operand.vmem [shape: f32[32,4], index: 2, kind: input, shape index: {}]
  %s3 = inlined_call_operand.vmem [shape: f32[1,4], index: 3, kind: input, shape index: {}]
  %s4 = inlined_call_operand.vmem [shape: f32[32,32], index: 4, kind: input, shape index: {}]
  %s5 = inlined_call_operand.vmem [shape: f32[1,32], index: 5, kind: input, shape index: {}]
  %s6 = inlined_call_operand.hbm [shape: f32[2,128], index: 6, kind: output, shape index: {}]
  %s7 = sld [smem:[#allocation0]]
  $region38: #{tpu_custom_call.1} parent=0
    _
  %s9 = ssub.s32 1, %s7
  %s10 = scalar_select 0, %s9, %s7
  $region1: #{tpu_custom_call.1} parent=0
    #allocation2 [shape = 'u8[2048]{0}', space=vmem, size = 0x800, scoped, tag = 'input window, operand 1, single buffered']
    #allocation3 [shape = 's32[1]{0}', space=sflag, size = 0x4, scoped, tag = 'scoped memory for tpu_custom_call.1']
    #allocation4 [shape = 's32[1]{0}', space=sflag, size = 0x4, scoped, tag = 'scoped memory for tpu_custom_call.1']
    #allocation5 [shape = 'u8[1024]{0}', space=vmem, size = 0x400, scoped, tag = 'output window, operand 0, single buffered']
    %11 = vsyncpa [#allocation3], 0
    %12 = vsyncpa [#allocation4], 0
    // Predicated region
    $region2: #{tpu_custom_call.1} parent=1 // pred_check
      _
    $region3: #{tpu_custom_call.1} parent=1 // pred_check_branch
      %14 = sbr.rel (0) target = $region5
    $region4: #{tpu_custom_call.1} parent=1 // pred_region
      _
    $region5: #{tpu_custom_call.1} parent=1 // pred_fallthru
      _
    // Predicated region
    $region6: #{tpu_custom_call.1} parent=1 // pred_check
      _
    $region7: #{tpu_custom_call.1} parent=1 // pred_check_branch
      %16 = sbr.rel (0) target = $region9
    $region8: #{tpu_custom_call.1} parent=1 // pred_region
      %s18 = ssub.s32 64, 64
      %19 = vsyncadd [#allocation3], %s18
      %s21 = sshll.u32 [#allocation2], 4
      %s22 = int_to_ptr.vmem [resolvable:$true] %s21
      %24 = dma.hbm_to_vmem [thread:$0]  %s1, 64, %s22, [#allocation3]
    $region9: #{tpu_custom_call.1} parent=1 // pred_fallthru
      _
    // Predicated region
    $region10: #{tpu_custom_call.1} parent=1 // pred_check
      _
    $region11: #{tpu_custom_call.1} parent=1 // pred_check_branch
      %26 = sbr.rel (0) target = $region13
    $region12: #{tpu_custom_call.1} parent=1 // pred_region
      _
    $region13: #{tpu_custom_call.1} parent=1 // pred_fallthru
      _
    // Predicated region
    $region14: #{tpu_custom_call.1} parent=1 // pred_check
      _
    $region15: #{tpu_custom_call.1} parent=1 // pred_check_branch
      %28 = sbr.rel (0) target = $region17
    $region16: #{tpu_custom_call.1} parent=1 // pred_region
      _
    $region17: #{tpu_custom_call.1} parent=1 // pred_fallthru
      _
    // Predicated region
    $region18: #{tpu_custom_call.1} parent=1 // pred_check
      _
    $region19: #{tpu_custom_call.1} parent=1 // pred_check_branch
      %30 = sbr.rel (0) target = $region21
    $region20: #{tpu_custom_call.1} parent=1 // pred_region
      _
    $region21: #{tpu_custom_call.1} parent=1 // pred_fallthru
      _
    // Predicated region
    $region22: #{tpu_custom_call.1} parent=1 // pred_check
      _
    $region23: #{tpu_custom_call.1} parent=1 // pred_check_branch
      %32 = sbr.rel (0) target = $region25
    $region24: #{tpu_custom_call.1} parent=1 // pred_region
      _
    $region25: #{tpu_custom_call.1} parent=1 // pred_fallthru
      _
    // Predicated region
    $region26: #{tpu_custom_call.1} parent=1 // pred_check
      _
    $region27: #{tpu_custom_call.1} parent=1 // pred_check_branch
      %34 = sbr.rel (0) target = $region29
    $region28: #{tpu_custom_call.1} parent=1 // pred_region
      %35 = dma.done [#allocation3], 64
    $region29: #{tpu_custom_call.1} parent=1 // pred_fallthru
      _
    %v36 = vld [vmem:[%s0] sm:$0xff]
    %v37 = vld [vmem:[%s0 + $0x8] sm:$0xff]
    %v38 = vld [vmem:[#allocation2] sm:$0xf]
    %vm39 = vcmask 261120
    %v40 = vsel %vm39, %v36, 0.0
    %41 = vadd.xlane.f32.xlu0 %v40
    %v42 = vpop.xlane.xlu0 %41
    %v43 = vsel %vm39, %v37, 0.0
    %44 = vadd.xlane.f32.xlu0 %v43
    %v45 = vpop.xlane.xlu0 %44
    %v46 = vrcp.pop 32.0
    %v47 = vmul.f32 %v42, %v46
    %v48 = vmul.f32 %v45, %v46
    %v49 = vsub.f32 %v36, %v47
    %v50 = vsub.f32 %v37, %v48
    %v51 = vmul.f32 %v49, %v49
    %v52 = vmul.f32 %v50, %v50
    %v53 = vsel %vm39, %v51, 0.0
    %54 = vadd.xlane.f32.xlu0 %v53
    %v55 = vpop.xlane.xlu0 %54
    %v56 = vsel %vm39, %v52, 0.0
    %57 = vadd.xlane.f32.xlu0 %v56
    %v58 = vpop.xlane.xlu0 %57
    %v59 = vmul.f32 %v55, %v46
    %v60 = vmul.f32 %v58, %v46
    %v61 = vadd.f32 %v59, 1e-05
    %v62 = vadd.f32 %v60, 1e-05
    %v63 = vrsqrt.pop %v61
    %v64 = vrsqrt.pop %v62
    %v65 = vmul.f32 %v49, %v63
    %v66 = vmul.f32 %v50, %v64
    %v67 = vlaneseq
    %v68 = vshrl.u32 %v67, 7
    %v69 = vsub.s32 0, %v68
    %v70 = vrot.slane %v38, %v69
    %v71 = vmul.f32 %v65, %v70
    %v72 = vmul.f32 %v66, %v70
    %v73 = vlaneseq
    %v74 = vshrl.u32 %v73, 7
    %v75 = vsub.s32 1, %v74
    %v76 = vrot.slane %v38, %v75
    %v77 = vadd.f32 %v71, %v76
    %v78 = vadd.f32 %v72, %v76
    %v79 = vld [vmem:[%s2] sm:$0xff]
    %v80 = vld [vmem:[%s2 + $0x8] sm:$0xff]
    %v81 = vld [vmem:[%s2 + $0x10] sm:$0xff]
    %v82 = vld [vmem:[%s2 + $0x18] sm:$0xff]
    %v83 = vld [vmem:[%s3] sm:$0x1]
    %v85 = vlaneseq
    %v86 = vshrl.u32 %v85, 7
    %v87 = vsub.s32 0, %v86
    %v88 = vrot.slane %v83, %v87
    %v91 = vsel %vm39, %v77, 0
    %v94 = vsel %vm39, %v78, 0
    %96 = vmatprep.subr.mxu0 0.0
    %97 = vmatpush1.msra.mxu0 %v79
    %98 = vmatprep.subr.mxu0 0.0
    %99 = vmatpush1.msra.mxu0 %v80
    %100 = vmatprep.subr.mxu0 0.0
    %101 = vmatpush1.msra.mxu0 %v81
    %102 = vmatprep.subr.mxu0 0.0
    %103 = vmatpush1.msra.mxu0 %v82
    %104 = vmatprep.subr.mxu0 0.0
    %105 = vmatpush1.msra.mxu0 0.0
    %106 = vmatprep.subr.mxu0 0.0
    %107 = vmatpush1.msra.mxu0 0.0
    %108 = vmatprep.subr.mxu0 0.0
    %109 = vmatpush1.msra.mxu0 0.0
    %110 = vmatprep.subr.mxu0 0.0
    %111 = vmatpush1.msra.mxu0 0.0
    %112 = vmatprep.subr.mxu0 0.0
    %113 = vmatpush1.msra.mxu0 0.0
    %114 = vmatprep.subr.mxu0 0.0
    %115 = vmatpush1.msra.mxu0 0.0
    %116 = vmatprep.subr.mxu0 0.0
    %117 = vmatpush1.msra.mxu0 0.0
    %118 = vmatprep.subr.mxu0 0.0
    %119 = vmatpush1.msra.mxu0 0.0
    %120 = vmatprep.subr.mxu0 0.0
    %121 = vmatpush1.msra.mxu0 0.0
    %122 = vmatprep.subr.mxu0 0.0
    %123 = vmatpush1.msra.mxu0 0.0
    %124 = vmatprep.subr.mxu0 0.0
    %125 = vmatpush1.msra.mxu0 0.0
    %126 = vmatprep.subr.mxu0 0.0
    %127 = vmatpush1.msra.mxu0 0.0
    %128 = vmatprep.subr.mxu0 0.0
    %129 = vmatpush1.msra.mxu0 0.0
    %130 = vmatprep.subr.mxu0 0.0
    %131 = vmatpush1.msra.mxu0 0.0
    %132 = vmatprep.subr.mxu0 0.0
    %133 = vmatpush1.msra.mxu0 0.0
    %134 = vmatprep.subr.mxu0 0.0
    %135 = vmatpush1.msra.mxu0 0.0
    %136 = vmatprep.subr.mxu0 0.0
    %137 = vmatpush1.msra.mxu0 0.0
    %138 = vmatprep.subr.mxu0 0.0
    %139 = vmatpush1.msra.mxu0 0.0
    %140 = vmatprep.subr.mxu0 0.0
    %141 = vmatpush1.msra.mxu0 0.0
    %142 = vmatprep.subr.mxu0 0.0
    %143 = vmatpush1.msra.mxu0 0.0
    %144 = vmatprep.subr.mxu0 0.0
    %145 = vmatpush1.msra.mxu0 0.0
    %146 = vmatprep.subr.mxu0 0.0
    %147 = vmatpush1.msra.mxu0 0.0
    %148 = vmatprep.subr.mxu0 0.0
    %149 = vmatpush1.msra.mxu0 0.0
    %150 = vmatprep.subr.mxu0 0.0
    %151 = vmatpush1.msra.mxu0 0.0
    %152 = vmatprep.subr.mxu0 0.0
    %153 = vmatpush1.msra.mxu0 0.0
    %154 = vmatprep.subr.mxu0 0.0
    %155 = vmatpush1.msra.mxu0 0.0
    %156 = vmatprep.subr.mxu0 0.0
    %157 = vmatpush1.msra.mxu0 0.0
    %158 = vmatprep.subr.mxu0 0.0
    %159 = vmatpush1.msra.mxu0 0.0
    %160 = vmatprep.mubr.f32.mxu0 0.0
    %161 = vmatmul.mubr.f32.gmra.mrb[0].mxu0 %v91
    %v162 = vpop.f32.mrb[0].mxu0
    %v163 = vadd.f32 %v88, %v162
    %v164 = vpop.f32.mrb[0].mxu0
    %165 = vmatprep.mubr.f32.mxu0 0.0
    %166 = vmatmul.mubr.f32.gmra.mrb[0].mxu0 %v94
    %v167 = vpop.f32.mrb[0].mxu0
    %v168 = vadd.f32 %v88, %v167
    %v169 = vpop.f32.mrb[0].mxu0
    %170 = vdwg.mxu0
    %v171 = vmul.f32 %v163, 0.17677669
    %v172 = vmul.f32 %v168, 0.17677669
    %vm173 = vcmask 31744
    %v174 = vsel %vm173, %v171, -inf
    %175 = vmax.xlane.f32.xlu0 %v174
    %v176 = vpop.xlane.xlu0 %175
    %v177 = vsel %vm173, %v172, -inf
    %178 = vmax.xlane.f32.xlu0 %v177
    %v179 = vpop.xlane.xlu0 %178
    %v180 = vsub.f32 %v171, %v176
    %v181 = vsub.f32 %v172, %v179
    %v182 = vmul.f32 %v180, 1.442695
    %v183 = vpow.pop %v182
    %v184 = vmul.f32 %v181, 1.442695
    %v185 = vpow.pop %v184
    %v186 = vsel %vm173, %v183, 0.0
    %187 = vadd.xlane.f32.xlu0 %v186
    %v188 = vpop.xlane.xlu0 %187
    %v189 = vsel %vm173, %v185, 0.0
    %190 = vadd.xlane.f32.xlu0 %v189
    %v191 = vpop.xlane.xlu0 %190
    %v192 = vrcp.pop %v188
    %v193 = vrcp.pop %v191
    %v194 = vmul.f32 %v183, %v192
    %v195 = vmul.f32 %v185, %v193
    %v196 = vld [vmem:[%s4] sm:$0xff]
    %v197 = vld [vmem:[%s4 + $0x8] sm:$0xff]
    %v198 = vld [vmem:[%s4 + $0x10] sm:$0xff]
    %v199 = vld [vmem:[%s4 + $0x18] sm:$0xff]
    %v200 = vld [vmem:[%s5] sm:$0x1]
    %202 = vset.pattern.permute.xlu0 0
    %203 = vperm.xlu0 %202, %v194
    %v204 = vpop.permute.xlu0 %203
    %207 = vset.pattern.permute.xlu0 0
    %208 = vperm.xlu0 %207, %v195
    %v209 = vpop.permute.xlu0 %208
    %v211 = vmul.f32 %v77, %v204
    %v212 = vmul.f32 %v78, %v209
    %v213 = vsel %vm39, %v211, 0.0
    %v214 = vrot.slane %v213, 4
    %v215 = vadd.f32 %v213, %v214
    %v216 = vrot.slane %v215, 2
    %v217 = vadd.f32 %v215, %v216
    %v218 = vrot.slane %v217, 1
    %v219 = vadd.f32 %v217, %v218
    %v220 = vsel %vm39, %v212, 0.0
    %v221 = vrot.slane %v220, 4
    %v222 = vadd.f32 %v220, %v221
    %v223 = vrot.slane %v222, 2
    %v224 = vadd.f32 %v222, %v223
    %v225 = vrot.slane %v224, 1
    %v226 = vadd.f32 %v224, %v225
    %vm229 = vcmask 1041409
    %v230 = vsel %vm229, %v226, %v219
    %vm232 = vcmask 254976
    %v233 = vsel %vm232, %v230, 0.0
    %234 = vadd.xlane.f32.xlu0 %v233
    %v235 = vpop.xlane.xlu0 %234
    %v236 = vmul.f32 %v235, %v46
    %v238 = vrot.slane %v236, 1
    %v241 = vsub.f32 %v219, %v236
    %v242 = vsub.f32 %v226, %v238
    %v243 = vmul.f32 %v241, %v241
    %v244 = vmul.f32 %v242, %v242
    %v247 = vrot.slane %v244, 7
    %v248 = vsel %vm229, %v247, %v243
    %v250 = vsel %vm232, %v248, 0.0
    %251 = vadd.xlane.f32.xlu0 %v250
    %v252 = vpop.xlane.xlu0 %251
    %v253 = vmul.f32 %v252, %v46
    %v254 = vadd.f32 %v253, 1e-05
    %v255 = vrsqrt.pop %v254
    %v257 = vrot.slane %v255, 1
    %v260 = vmul.f32 %v241, %v255
    %v261 = vmul.f32 %v242, %v257
    %v262 = vlaneseq
    %v263 = vshrl.u32 %v262, 7
    %v264 = vsub.s32 2, %v263
    %v265 = vrot.slane %v38, %v264
    %v266 = vmul.f32 %v260, %v265
    %v267 = vmul.f32 %v261, %v265
    %v268 = vlaneseq
    %v269 = vshrl.u32 %v268, 7
    %v270 = vsub.s32 3, %v269
    %v271 = vrot.slane %v38, %v270
    %v272 = vadd.f32 %v266, %v271
    %v273 = vadd.f32 %v267, %v271
    %v275 = vlaneseq
    %v276 = vshrl.u32 %v275, 7
    %v277 = vsub.s32 0, %v276
    %v278 = vrot.slane %v200, %v277
    %v282 = vrot.slane %v273, 7
    %v283 = vsel %vm229, %v282, %v272
    %v284 = vsel %vm39, %v283, 0
    %286 = vmatprep.subr.mxu0 0.0
    %287 = vmatpush1.msra.mxu0 %v196
    %288 = vmatprep.subr.mxu0 0.0
    %289 = vmatpush1.msra.mxu0 %v197
    %290 = vmatprep.subr.mxu0 0.0
    %291 = vmatpush1.msra.mxu0 %v198
    %292 = vmatprep.subr.mxu0 0.0
    %293 = vmatpush1.msra.mxu0 %v199
    %294 = vmatprep.subr.mxu0 0.0
    %295 = vmatpush1.msra.mxu0 0.0
    %296 = vmatprep.subr.mxu0 0.0
    %297 = vmatpush1.msra.mxu0 0.0
    %298 = vmatprep.subr.mxu0 0.0
    %299 = vmatpush1.msra.mxu0 0.0
    %300 = vmatprep.subr.mxu0 0.0
    %301 = vmatpush1.msra.mxu0 0.0
    %302 = vmatprep.subr.mxu0 0.0
    %303 = vmatpush1.msra.mxu0 0.0
    %304 = vmatprep.subr.mxu0 0.0
    %305 = vmatpush1.msra.mxu0 0.0
    %306 = vmatprep.subr.mxu0 0.0
    %307 = vmatpush1.msra.mxu0 0.0
    %308 = vmatprep.subr.mxu0 0.0
    %309 = vmatpush1.msra.mxu0 0.0
    %310 = vmatprep.subr.mxu0 0.0
    %311 = vmatpush1.msra.mxu0 0.0
    %312 = vmatprep.subr.mxu0 0.0
    %313 = vmatpush1.msra.mxu0 0.0
    %314 = vmatprep.subr.mxu0 0.0
    %315 = vmatpush1.msra.mxu0 0.0
    %316 = vmatprep.subr.mxu0 0.0
    %317 = vmatpush1.msra.mxu0 0.0
    %318 = vmatprep.subr.mxu0 0.0
    %319 = vmatpush1.msra.mxu0 0.0
    %320 = vmatprep.subr.mxu0 0.0
    %321 = vmatpush1.msra.mxu0 0.0
    %322 = vmatprep.subr.mxu0 0.0
    %323 = vmatpush1.msra.mxu0 0.0
    %324 = vmatprep.subr.mxu0 0.0
    %325 = vmatpush1.msra.mxu0 0.0
    %326 = vmatprep.subr.mxu0 0.0
    %327 = vmatpush1.msra.mxu0 0.0
    %328 = vmatprep.subr.mxu0 0.0
    %329 = vmatpush1.msra.mxu0 0.0
    %330 = vmatprep.subr.mxu0 0.0
    %331 = vmatpush1.msra.mxu0 0.0
    %332 = vmatprep.subr.mxu0 0.0
    %333 = vmatpush1.msra.mxu0 0.0
    %334 = vmatprep.subr.mxu0 0.0
    %335 = vmatpush1.msra.mxu0 0.0
    %336 = vmatprep.subr.mxu0 0.0
    %337 = vmatpush1.msra.mxu0 0.0
    %338 = vmatprep.subr.mxu0 0.0
    %339 = vmatpush1.msra.mxu0 0.0
    %340 = vmatprep.subr.mxu0 0.0
    %341 = vmatpush1.msra.mxu0 0.0
    %342 = vmatprep.subr.mxu0 0.0
    %343 = vmatpush1.msra.mxu0 0.0
    %344 = vmatprep.subr.mxu0 0.0
    %345 = vmatpush1.msra.mxu0 0.0
    %346 = vmatprep.subr.mxu0 0.0
    %347 = vmatpush1.msra.mxu0 0.0
    %348 = vmatprep.subr.mxu0 0.0
    %349 = vmatpush1.msra.mxu0 0.0
    %350 = vmatprep.mubr.f32.mxu0 0.0
    %351 = vmatmul.mubr.f32.gmra.mrb[0].mxu0 %v284
    %v352 = vpop.f32.mrb[0].mxu0
    %v353 = vadd.f32 %v278, %v352
    %v354 = vpop.f32.mrb[0].mxu0
    %355 = vdwg.mxu0
    %356 = vst.msk [vmem:[#allocation5] sm:$0x3] %vm232, %v353
    %357 = vset.pattern.permute.xlu0 1
    %358 = vperm.xlu0 %357, %v194
    %v359 = vpop.permute.xlu0 %358
    %361 = vset.pattern.permute.xlu0 1
    %362 = vperm.xlu0 %361, %v195
    %v363 = vpop.permute.xlu0 %362
    %v365 = vmul.f32 %v77, %v359
    %v366 = vmul.f32 %v78, %v363
    %v367 = vsel %vm39, %v365, 0.0
    %v368 = vrot.slane %v367, 4
    %v369 = vadd.f32 %v367, %v368
    %v370 = vrot.slane %v369, 2
    %v371 = vadd.f32 %v369, %v370
    %v372 = vrot.slane %v371, 1
    %v373 = vadd.f32 %v371, %v372
    %v374 = vsel %vm39, %v366, 0.0
    %v375 = vrot.slane %v374, 4
    %v376 = vadd.f32 %v374, %v375
    %v377 = vrot.slane %v376, 2
    %v378 = vadd.f32 %v376, %v377
    %v379 = vrot.slane %v378, 1
    %v380 = vadd.f32 %v378, %v379
    %v383 = vsel %vm229, %v380, %v373
    %v385 = vsel %vm232, %v383, 0.0
    %386 = vadd.xlane.f32.xlu0 %v385
    %v387 = vpop.xlane.xlu0 %386
    %v388 = vmul.f32 %v387, %v46
    %v390 = vrot.slane %v388, 1
    %v393 = vsub.f32 %v373, %v388
    %v394 = vsub.f32 %v380, %v390
    %v395 = vmul.f32 %v393, %v393
    %v396 = vmul.f32 %v394, %v394
    %v399 = vrot.slane %v396, 7
    %v400 = vsel %vm229, %v399, %v395
    %v402 = vsel %vm232, %v400, 0.0
    %403 = vadd.xlane.f32.xlu0 %v402
    %v404 = vpop.xlane.xlu0 %403
    %v405 = vmul.f32 %v404, %v46
    %v406 = vadd.f32 %v405, 1e-05
    %v407 = vrsqrt.pop %v406
    %v409 = vrot.slane %v407, 1
    %v412 = vmul.f32 %v393, %v407
    %v413 = vmul.f32 %v394, %v409
    %v414 = vmul.f32 %v412, %v265
    %v415 = vmul.f32 %v413, %v265
    %v416 = vadd.f32 %v414, %v271
    %v417 = vadd.f32 %v415, %v271
    %v420 = vrot.slane %v417, 7
    %v421 = vsel %vm229, %v420, %v416
    %v422 = vsel %vm39, %v421, 0
    %424 = vmatprep.subr.mxu0 0.0
    %425 = vmatpush1.msra.mxu0 %v196
    %426 = vmatprep.subr.mxu0 0.0
    %427 = vmatpush1.msra.mxu0 %v197
    %428 = vmatprep.subr.mxu0 0.0
    %429 = vmatpush1.msra.mxu0 %v198
    %430 = vmatprep.subr.mxu0 0.0
    %431 = vmatpush1.msra.mxu0 %v199
    %432 = vmatprep.subr.mxu0 0.0
    %433 = vmatpush1.msra.mxu0 0.0
    %434 = vmatprep.subr.mxu0 0.0
    %435 = vmatpush1.msra.mxu0 0.0
    %436 = vmatprep.subr.mxu0 0.0
    %437 = vmatpush1.msra.mxu0 0.0
    %438 = vmatprep.subr.mxu0 0.0
    %439 = vmatpush1.msra.mxu0 0.0
    %440 = vmatprep.subr.mxu0 0.0
    %441 = vmatpush1.msra.mxu0 0.0
    %442 = vmatprep.subr.mxu0 0.0
    %443 = vmatpush1.msra.mxu0 0.0
    %444 = vmatprep.subr.mxu0 0.0
    %445 = vmatpush1.msra.mxu0 0.0
    %446 = vmatprep.subr.mxu0 0.0
    %447 = vmatpush1.msra.mxu0 0.0
    %448 = vmatprep.subr.mxu0 0.0
    %449 = vmatpush1.msra.mxu0 0.0
    %450 = vmatprep.subr.mxu0 0.0
    %451 = vmatpush1.msra.mxu0 0.0
    %452 = vmatprep.subr.mxu0 0.0
    %453 = vmatpush1.msra.mxu0 0.0
    %454 = vmatprep.subr.mxu0 0.0
    %455 = vmatpush1.msra.mxu0 0.0
    %456 = vmatprep.subr.mxu0 0.0
    %457 = vmatpush1.msra.mxu0 0.0
    %458 = vmatprep.subr.mxu0 0.0
    %459 = vmatpush1.msra.mxu0 0.0
    %460 = vmatprep.subr.mxu0 0.0
    %461 = vmatpush1.msra.mxu0 0.0
    %462 = vmatprep.subr.mxu0 0.0
    %463 = vmatpush1.msra.mxu0 0.0
    %464 = vmatprep.subr.mxu0 0.0
    %465 = vmatpush1.msra.mxu0 0.0
    %466 = vmatprep.subr.mxu0 0.0
    %467 = vmatpush1.msra.mxu0 0.0
    %468 = vmatprep.subr.mxu0 0.0
    %469 = vmatpush1.msra.mxu0 0.0
    %470 = vmatprep.subr.mxu0 0.0
    %471 = vmatpush1.msra.mxu0 0.0
    %472 = vmatprep.subr.mxu0 0.0
    %473 = vmatpush1.msra.mxu0 0.0
    %474 = vmatprep.subr.mxu0 0.0
    %475 = vmatpush1.msra.mxu0 0.0
    %476 = vmatprep.subr.mxu0 0.0
    %477 = vmatpush1.msra.mxu0 0.0
    %478 = vmatprep.subr.mxu0 0.0
    %479 = vmatpush1.msra.mxu0 0.0
    %480 = vmatprep.subr.mxu0 0.0
    %481 = vmatpush1.msra.mxu0 0.0
    %482 = vmatprep.subr.mxu0 0.0
    %483 = vmatpush1.msra.mxu0 0.0
    %484 = vmatprep.subr.mxu0 0.0
    %485 = vmatpush1.msra.mxu0 0.0
    %486 = vmatprep.subr.mxu0 0.0
    %487 = vmatpush1.msra.mxu0 0.0
    %488 = vmatprep.mubr.f32.mxu0 0.0
    %489 = vmatmul.mubr.f32.gmra.mrb[0].mxu0 %v422
    %v490 = vpop.f32.mrb[0].mxu0
    %v491 = vadd.f32 %v278, %v490
    %v492 = vpop.f32.mrb[0].mxu0
    %493 = vdwg.mxu0
    %495 = vrot.lane.b32.xlu0 %v491, 32
    %v496 = vpop.permute.xlu0 %495
    %vm498 = vcmask 517376
    %499 = vst.msk [vmem:[#allocation5] sm:$0x3] %vm498, %v496
    %500 = vset.pattern.permute.xlu0 2
    %501 = vperm.xlu0 %500, %v194
    %v502 = vpop.permute.xlu0 %501
    %504 = vset.pattern.permute.xlu0 2
    %505 = vperm.xlu0 %504, %v195
    %v506 = vpop.permute.xlu0 %505
    %v508 = vmul.f32 %v77, %v502
    %v509 = vmul.f32 %v78, %v506
    %v510 = vsel %vm39, %v508, 0.0
    %v511 = vrot.slane %v510, 4
    %v512 = vadd.f32 %v510, %v511
    %v513 = vrot.slane %v512, 2
    %v514 = vadd.f32 %v512, %v513
    %v515 = vrot.slane %v514, 1
    %v516 = vadd.f32 %v514, %v515
    %v517 = vsel %vm39, %v509, 0.0
    %v518 = vrot.slane %v517, 4
    %v519 = vadd.f32 %v517, %v518
    %v520 = vrot.slane %v519, 2
    %v521 = vadd.f32 %v519, %v520
    %v522 = vrot.slane %v521, 1
    %v523 = vadd.f32 %v521, %v522
    %v526 = vsel %vm229, %v523, %v516
    %v528 = vsel %vm232, %v526, 0.0
    %529 = vadd.xlane.f32.xlu0 %v528
    %v530 = vpop.xlane.xlu0 %529
    %v531 = vmul.f32 %v530, %v46
    %v533 = vrot.slane %v531, 1
    %v536 = vsub.f32 %v516, %v531
    %v537 = vsub.f32 %v523, %v533
    %v538 = vmul.f32 %v536, %v536
    %v539 = vmul.f32 %v537, %v537
    %v542 = vrot.slane %v539, 7
    %v543 = vsel %vm229, %v542, %v538
    %v545 = vsel %vm232, %v543, 0.0
    %546 = vadd.xlane.f32.xlu0 %v545
    %v547 = vpop.xlane.xlu0 %546
    %v548 = vmul.f32 %v547, %v46
    %v549 = vadd.f32 %v548, 1e-05
    %v550 = vrsqrt.pop %v549
    %v552 = vrot.slane %v550, 1
    %v555 = vmul.f32 %v536, %v550
    %v556 = vmul.f32 %v537, %v552
    %v557 = vmul.f32 %v555, %v265
    %v558 = vmul.f32 %v556, %v265
    %v559 = vadd.f32 %v557, %v271
    %v560 = vadd.f32 %v558, %v271
    %v563 = vrot.slane %v560, 7
    %v564 = vsel %vm229, %v563, %v559
    %v565 = vsel %vm39, %v564, 0
    %567 = vmatprep.subr.mxu0 0.0
    %568 = vmatpush1.msra.mxu0 %v196
    %569 = vmatprep.subr.mxu0 0.0
    %570 = vmatpush1.msra.mxu0 %v197
    %571 = vmatprep.subr.mxu0 0.0
    %572 = vmatpush1.msra.mxu0 %v198
    %573 = vmatprep.subr.mxu0 0.0
    %574 = vmatpush1.msra.mxu0 %v199
    %575 = vmatprep.subr.mxu0 0.0
    %576 = vmatpush1.msra.mxu0 0.0
    %577 = vmatprep.subr.mxu0 0.0
    %578 = vmatpush1.msra.mxu0 0.0
    %579 = vmatprep.subr.mxu0 0.0
    %580 = vmatpush1.msra.mxu0 0.0
    %581 = vmatprep.subr.mxu0 0.0
    %582 = vmatpush1.msra.mxu0 0.0
    %583 = vmatprep.subr.mxu0 0.0
    %584 = vmatpush1.msra.mxu0 0.0
    %585 = vmatprep.subr.mxu0 0.0
    %586 = vmatpush1.msra.mxu0 0.0
    %587 = vmatprep.subr.mxu0 0.0
    %588 = vmatpush1.msra.mxu0 0.0
    %589 = vmatprep.subr.mxu0 0.0
    %590 = vmatpush1.msra.mxu0 0.0
    %591 = vmatprep.subr.mxu0 0.0
    %592 = vmatpush1.msra.mxu0 0.0
    %593 = vmatprep.subr.mxu0 0.0
    %594 = vmatpush1.msra.mxu0 0.0
    %595 = vmatprep.subr.mxu0 0.0
    %596 = vmatpush1.msra.mxu0 0.0
    %597 = vmatprep.subr.mxu0 0.0
    %598 = vmatpush1.msra.mxu0 0.0
    %599 = vmatprep.subr.mxu0 0.0
    %600 = vmatpush1.msra.mxu0 0.0
    %601 = vmatprep.subr.mxu0 0.0
    %602 = vmatpush1.msra.mxu0 0.0
    %603 = vmatprep.subr.mxu0 0.0
    %604 = vmatpush1.msra.mxu0 0.0
    %605 = vmatprep.subr.mxu0 0.0
    %606 = vmatpush1.msra.mxu0 0.0
    %607 = vmatprep.subr.mxu0 0.0
    %608 = vmatpush1.msra.mxu0 0.0
    %609 = vmatprep.subr.mxu0 0.0
    %610 = vmatpush1.msra.mxu0 0.0
    %611 = vmatprep.subr.mxu0 0.0
    %612 = vmatpush1.msra.mxu0 0.0
    %613 = vmatprep.subr.mxu0 0.0
    %614 = vmatpush1.msra.mxu0 0.0
    %615 = vmatprep.subr.mxu0 0.0
    %616 = vmatpush1.msra.mxu0 0.0
    %617 = vmatprep.subr.mxu0 0.0
    %618 = vmatpush1.msra.mxu0 0.0
    %619 = vmatprep.subr.mxu0 0.0
    %620 = vmatpush1.msra.mxu0 0.0
    %621 = vmatprep.subr.mxu0 0.0
    %622 = vmatpush1.msra.mxu0 0.0
    %623 = vmatprep.subr.mxu0 0.0
    %624 = vmatpush1.msra.mxu0 0.0
    %625 = vmatprep.subr.mxu0 0.0
    %626 = vmatpush1.msra.mxu0 0.0
    %627 = vmatprep.subr.mxu0 0.0
    %628 = vmatpush1.msra.mxu0 0.0
    %629 = vmatprep.subr.mxu0 0.0
    %630 = vmatpush1.msra.mxu0 0.0
    %631 = vmatprep.mubr.f32.mxu0 0.0
    %632 = vmatmul.mubr.f32.gmra.mrb[0].mxu0 %v565
    %v633 = vpop.f32.mrb[0].mxu0
    %v634 = vadd.f32 %v278, %v633
    %v635 = vpop.f32.mrb[0].mxu0
    %636 = vdwg.mxu0
    %638 = vrot.lane.b32.xlu0 %v634, 64
    %v639 = vpop.permute.xlu0 %638
    %vm641 = vcmask 779776
    %642 = vst.msk [vmem:[#allocation5] sm:$0x3] %vm641, %v639
    %643 = vset.pattern.permute.xlu0 3
    %644 = vperm.xlu0 %643, %v194
    %v645 = vpop.permute.xlu0 %644
    %647 = vset.pattern.permute.xlu0 3
    %648 = vperm.xlu0 %647, %v195
    %v649 = vpop.permute.xlu0 %648
    %v651 = vmul.f32 %v77, %v645
    %v652 = vmul.f32 %v78, %v649
    %v653 = vsel %vm39, %v651, 0.0
    %v654 = vrot.slane %v653, 4
    %v655 = vadd.f32 %v653, %v654
    %v656 = vrot.slane %v655, 2
    %v657 = vadd.f32 %v655, %v656
    %v658 = vrot.slane %v657, 1
    %v659 = vadd.f32 %v657, %v658
    %v660 = vsel %vm39, %v652, 0.0
    %v661 = vrot.slane %v660, 4
    %v662 = vadd.f32 %v660, %v661
    %v663 = vrot.slane %v662, 2
    %v664 = vadd.f32 %v662, %v663
    %v665 = vrot.slane %v664, 1
    %v666 = vadd.f32 %v664, %v665
    %v669 = vsel %vm229, %v666, %v659
    %v671 = vsel %vm232, %v669, 0.0
    %672 = vadd.xlane.f32.xlu0 %v671
    %v673 = vpop.xlane.xlu0 %672
    %v674 = vmul.f32 %v673, %v46
    %v676 = vrot.slane %v674, 1
    %v679 = vsub.f32 %v659, %v674
    %v680 = vsub.f32 %v666, %v676
    %v681 = vmul.f32 %v679, %v679
    %v682 = vmul.f32 %v680, %v680
    %v685 = vrot.slane %v682, 7
    %v686 = vsel %vm229, %v685, %v681
    %v688 = vsel %vm232, %v686, 0.0
    %689 = vadd.xlane.f32.xlu0 %v688
    %v690 = vpop.xlane.xlu0 %689
    %v691 = vmul.f32 %v690, %v46
    %v692 = vadd.f32 %v691, 1e-05
    %v693 = vrsqrt.pop %v692
    %v695 = vrot.slane %v693, 1
    %v698 = vmul.f32 %v679, %v693
    %v699 = vmul.f32 %v680, %v695
    %v700 = vmul.f32 %v698, %v265
    %v701 = vmul.f32 %v699, %v265
    %v702 = vadd.f32 %v700, %v271
    %v703 = vadd.f32 %v701, %v271
    %v706 = vrot.slane %v703, 7
    %v707 = vsel %vm229, %v706, %v702
    %v708 = vsel %vm39, %v707, 0
    %710 = vmatprep.subr.mxu0 0.0
    %711 = vmatpush1.msra.mxu0 %v196
    %712 = vmatprep.subr.mxu0 0.0
    %713 = vmatpush1.msra.mxu0 %v197
    %714 = vmatprep.subr.mxu0 0.0
    %715 = vmatpush1.msra.mxu0 %v198
    %716 = vmatprep.subr.mxu0 0.0
    %717 = vmatpush1.msra.mxu0 %v199
    %718 = vmatprep.subr.mxu0 0.0
    %719 = vmatpush1.msra.mxu0 0.0
    %720 = vmatprep.subr.mxu0 0.0
    %721 = vmatpush1.msra.mxu0 0.0
    %722 = vmatprep.subr.mxu0 0.0
    %723 = vmatpush1.msra.mxu0 0.0
    %724 = vmatprep.subr.mxu0 0.0
    %725 = vmatpush1.msra.mxu0 0.0
    %726 = vmatprep.subr.mxu0 0.0
    %727 = vmatpush1.msra.mxu0 0.0
    %728 = vmatprep.subr.mxu0 0.0
    %729 = vmatpush1.msra.mxu0 0.0
    %730 = vmatprep.subr.mxu0 0.0
    %731 = vmatpush1.msra.mxu0 0.0
    %732 = vmatprep.subr.mxu0 0.0
    %733 = vmatpush1.msra.mxu0 0.0
    %734 = vmatprep.subr.mxu0 0.0
    %735 = vmatpush1.msra.mxu0 0.0
    %736 = vmatprep.subr.mxu0 0.0
    %737 = vmatpush1.msra.mxu0 0.0
    %738 = vmatprep.subr.mxu0 0.0
    %739 = vmatpush1.msra.mxu0 0.0
    %740 = vmatprep.subr.mxu0 0.0
    %741 = vmatpush1.msra.mxu0 0.0
    %742 = vmatprep.subr.mxu0 0.0
    %743 = vmatpush1.msra.mxu0 0.0
    %744 = vmatprep.subr.mxu0 0.0
    %745 = vmatpush1.msra.mxu0 0.0
    %746 = vmatprep.subr.mxu0 0.0
    %747 = vmatpush1.msra.mxu0 0.0
    %748 = vmatprep.subr.mxu0 0.0
    %749 = vmatpush1.msra.mxu0 0.0
    %750 = vmatprep.subr.mxu0 0.0
    %751 = vmatpush1.msra.mxu0 0.0
    %752 = vmatprep.subr.mxu0 0.0
    %753 = vmatpush1.msra.mxu0 0.0
    %754 = vmatprep.subr.mxu0 0.0
    %755 = vmatpush1.msra.mxu0 0.0
    %756 = vmatprep.subr.mxu0 0.0
    %757 = vmatpush1.msra.mxu0 0.0
    %758 = vmatprep.subr.mxu0 0.0
    %759 = vmatpush1.msra.mxu0 0.0
    %760 = vmatprep.subr.mxu0 0.0
    %761 = vmatpush1.msra.mxu0 0.0
    %762 = vmatprep.subr.mxu0 0.0
    %763 = vmatpush1.msra.mxu0 0.0
    %764 = vmatprep.subr.mxu0 0.0
    %765 = vmatpush1.msra.mxu0 0.0
    %766 = vmatprep.subr.mxu0 0.0
    %767 = vmatpush1.msra.mxu0 0.0
    %768 = vmatprep.subr.mxu0 0.0
    %769 = vmatpush1.msra.mxu0 0.0
    %770 = vmatprep.subr.mxu0 0.0
    %771 = vmatpush1.msra.mxu0 0.0
    %772 = vmatprep.subr.mxu0 0.0
    %773 = vmatpush1.msra.mxu0 0.0
    %774 = vmatprep.mubr.f32.mxu0 0.0
    %775 = vmatmul.mubr.f32.gmra.mrb[0].mxu0 %v708
    %v776 = vpop.f32.mrb[0].mxu0
    %v777 = vadd.f32 %v278, %v776
    %v778 = vpop.f32.mrb[0].mxu0
    %779 = vdwg.mxu0
    %781 = vrot.lane.b32.xlu0 %v777, 96
    %v782 = vpop.permute.xlu0 %781
    %vm784 = vcmask 1042176
    %785 = vst.msk [vmem:[#allocation5] sm:$0x3] %vm784, %v782
    // Predicated region
    $region30: #{tpu_custom_call.1} parent=1 // pred_check
      _
    $region31: #{tpu_custom_call.1} parent=1 // pred_check_branch
      %787 = sbr.rel (0) target = $region33
    $region32: #{tpu_custom_call.1} parent=1 // pred_region
      %s789 = ssub.s32 32, 32
      %790 = vsyncadd [#allocation4], %s789
      %s792 = sshll.u32 [#allocation5], 4
      %s793 = int_to_ptr.vmem [resolvable:$true] %s792
      %795 = dma.vmem_to_hbm [thread:$0]  %s793, 32, %s6, [#allocation4]
    $region33: #{tpu_custom_call.1} parent=1 // pred_fallthru
      _
    // Predicated region
    $region34: #{tpu_custom_call.1} parent=1 // pred_check
      _
    $region35: #{tpu_custom_call.1} parent=1 // pred_check_branch
      %797 = sbr.rel (0) target = $region37
    $region36: #{tpu_custom_call.1} parent=1 // pred_region
      %798 = dma.done [#allocation4], 32
    $region37: #{tpu_custom_call.1} parent=1 // pred_fallthru
      _
    %799 = vsyncpa [#allocation3], 1
    %800 = vsyncpa [#allocation4], 1

</llo_original>
